<compile_context>
chip_gen: v6e
topology: v6e:2x2x1
jax: 0.10.0
libtpu: 0.0.40
codegen_flags: <defaults>
</compile_context>

<pallas_src>
import functools

import jax
import jax.numpy as jnp
from jax.experimental import pallas as pl
from jax.experimental.pallas import tpu as pltpu


# ------------------------------ tiling helpers -------------------------------

def _round_up(x, m):
    return (x + m - 1) // m * m


def _tile(dim, pref, align):
    """Tile size for one dimension.

    Returns the full dim if it already fits the preference, else the largest
    `align`-aligned divisor of `dim` that is <= pref, else the aligned
    preference itself (the caller zero-pads `dim` to a multiple of it).  It
    never falls back to a huge full dimension.
    """
    if dim <= pref:
        return dim
    pref_a = max(align, (pref // align) * align)
    t = pref_a
    while t >= align:
        if dim % t == 0:
            return t
        t -= align
    return pref_a


def _pad_axis(x, axis, new_size):
    pad = new_size - x.shape[axis]
    if pad == 0:
        return x
    widths = [(0, 0)] * x.ndim
    widths[axis] = (0, pad)
    return jnp.pad(x, widths)


def _vmem_limit_bytes():
    try:
        cap = int(pltpu.get_tpu_info().vmem_capacity_bytes)
    except Exception:
        cap = 128 * 1024 * 1024
    # Leave headroom; v7x has only 64 MiB physical VMEM per TensorCore.
    return min(96 * 1024 * 1024, (cap * 3) // 4)


_VMEM_LIMIT = _vmem_limit_bytes()


def _cparams(dims):
    return pltpu.CompilerParams(dimension_semantics=dims,
                                vmem_limit_bytes=_VMEM_LIMIT)


# ----------------------------- Pallas kernels --------------------------------

def _layernorm_kernel(x_ref, g_ref, b_ref, o_ref, *, eps):
    x = x_ref[...].astype(jnp.float32)
    mean = jnp.mean(x, axis=-1, keepdims=True)
    var = jnp.mean(jnp.square(x - mean), axis=-1, keepdims=True)
    y = (x - mean) * jax.lax.rsqrt(var + eps)
    o_ref[...] = (y * g_ref[...].astype(jnp.float32)
                  + b_ref[...].astype(jnp.float32)).astype(o_ref.dtype)


def _linear_kernel(x_ref, w_ref, o_ref):
    # Full-K contraction: one MXU call per output tile, no accumulator revisit.
    o_ref[...] = jnp.dot(x_ref[...], w_ref[...],
                         preferred_element_type=jnp.float32).astype(o_ref.dtype)


def _linear_bias_kernel(x_ref, w_ref, b_ref, o_ref):
    acc = jnp.dot(x_ref[...], w_ref[...], preferred_element_type=jnp.float32)
    o_ref[...] = (acc + b_ref[...].astype(jnp.float32)).astype(o_ref.dtype)


def _rope_kernel(x_ref, cos_ref, sin_ref, o_ref, *, rot, scale):
    # All heads per grid step: x_ref is [n_heads, tq, D]; partial NeoX rotary.
    # `scale` folds the 1/sqrt(head_dim) attention scale into q here.
    x = x_ref[...].astype(jnp.float32)
    cos = cos_ref[...][None, :, :]
    sin = sin_ref[...][None, :, :]
    half = rot // 2
    x1 = x[..., :half]
    x2 = x[..., half:rot]
    xp = x[..., rot:]
    r1 = x1 * cos - x2 * sin
    r2 = x2 * cos + x1 * sin
    o_ref[...] = (scale * jnp.concatenate([r1, r2, xp], axis=-1)).astype(o_ref.dtype)


def _flash_attn_kernel(q_ref, k_ref, v_ref, o_ref, m_ref, l_ref, acc_ref,
                       *, tq, tk):
    # grid = (head, q_tile, kv_tile); kv_tile is the (arbitrary) reduction axis.
    qi = pl.program_id(1)
    ki = pl.program_id(2)

    @pl.when(ki == 0)
    def _():
        m_ref[...] = jnp.full(m_ref.shape, -1e30, dtype=jnp.float32)
        l_ref[...] = jnp.zeros_like(l_ref)
        acc_ref[...] = jnp.zeros_like(acc_ref)

    # Causal skip: tile contributes iff its smallest key idx <= largest q idx.
    # (The K/V BlockSpec index_maps are clamped to the same condition, so the
    # skipped iterations also re-use the previous block and skip the DMA.)
    @pl.when(ki * tk <= qi * tq + (tq - 1))
    def _():
        q = q_ref[...]
        k = k_ref[...]
        # Contract last axes of both operands -> no explicit K transpose.
        s = jax.lax.dot_general(q, k, (((1,), (1,)), ((), ())),
                                preferred_element_type=jnp.float32)
        q_idx = qi * tq + jax.lax.broadcasted_iota(jnp.int32, (tq, tk), 0)
        k_idx = ki * tk + jax.lax.broadcasted_iota(jnp.int32, (tq, tk), 1)
        s = jnp.where(k_idx <= q_idx, s, -1e30)

        m_prev = m_ref[...]
        m_new = jnp.maximum(m_prev, jnp.max(s, axis=-1, keepdims=True))
        alpha = jnp.exp(m_prev - m_new)
        p = jnp.exp(s - m_new)
        l_ref[...] = alpha * l_ref[...] + jnp.sum(p, axis=-1, keepdims=True)
        acc_ref[...] = alpha * acc_ref[...] + jnp.dot(
            p.astype(v_ref.dtype), v_ref[...],
            preferred_element_type=jnp.float32)
        m_ref[...] = m_new

    @pl.when(ki == pl.num_programs(2) - 1)
    def _():
        o_ref[...] = (acc_ref[...] *
                      pl.reciprocal(l_ref[...], approx=True)).astype(o_ref.dtype)


def _mlp_kernel(x_ref, wg_ref, wu_ref, wd_ref, o_ref, acc_ref):
    # grid = (row_tile, intermediate_tile); intermediate is the reduction axis.
    ii = pl.program_id(1)

    @pl.when(ii == 0)
    def _():
        acc_ref[...] = jnp.zeros_like(acc_ref)

    x = x_ref[...]
    g = jnp.dot(x, wg_ref[...], preferred_element_type=jnp.float32)
    u = jnp.dot(x, wu_ref[...], preferred_element_type=jnp.float32)
    # SiluAndMul; cast to the model dtype before the down matmul (matches the
    # PyTorch module, which runs the whole MLP in the model dtype).
    h = (g * jax.nn.sigmoid(g) * u).astype(x.dtype)
    acc_ref[...] += jnp.dot(h, wd_ref[...], preferred_element_type=jnp.float32)

    @pl.when(ii == pl.num_programs(1) - 1)
    def _():
        o_ref[...] = acc_ref[...].astype(o_ref.dtype)


# ------------------------------- wrappers -------------------------------------

def layernorm(x, gamma, beta, eps, *, tm=512):
    T, Hd = x.shape
    tm = _tile(T, tm, 8)
    Tp = _round_up(T, tm)
    xp = _pad_axis(x, 0, Tp)
    out = pl.pallas_call(
        functools.partial(_layernorm_kernel, eps=eps),
        out_shape=jax.ShapeDtypeStruct((Tp, Hd), x.dtype),
        grid=(Tp // tm,),
        in_specs=[pl.BlockSpec((tm, Hd), lambda i: (i, 0)),
                  pl.BlockSpec((1, Hd), lambda i: (0, 0)),
                  pl.BlockSpec((1, Hd), lambda i: (0, 0))],
        out_specs=pl.BlockSpec((tm, Hd), lambda i: (i, 0)),
        compiler_params=_cparams(("parallel",)),
    )(xp, gamma.reshape(1, Hd), beta.reshape(1, Hd))
    return out[:T] if Tp != T else out


def linear(x, w, b=None, *, tm=256, tn=512):
    """y = x @ w (+ b).  Full-K contraction; grid over (rows, out cols) only."""
    M, K = x.shape
    N = w.shape[1]
    tm = _tile(M, tm, 8)
    tn = _tile(N, tn, 128)
    Mp, Np = _round_up(M, tm), _round_up(N, tn)
    xp = _pad_axis(x, 0, Mp)
    wp = _pad_axis(w, 1, Np)

    in_specs = [pl.BlockSpec((tm, K), lambda i, j: (i, 0)),
                pl.BlockSpec((K, tn), lambda i, j: (0, j))]
    args = [xp, wp]
    if b is None:
        kernel = _linear_kernel
    else:
        kernel = _linear_bias_kernel
        in_specs.append(pl.BlockSpec((1, tn), lambda i, j: (0, j)))
        args.append(_pad_axis(b.reshape(1, N), 1, Np))

    out = pl.pallas_call(
        kernel,
        out_shape=jax.ShapeDtypeStruct((Mp, Np), x.dtype),
        grid=(Mp // tm, Np // tn),
        in_specs=in_specs,
        out_specs=pl.BlockSpec((tm, tn), lambda i, j: (i, j)),
        compiler_params=_cparams(("parallel", "parallel")),
    )(*args)
    if (Mp, Np) != (M, N):
        out = out[:M, :N]
    return out


def apply_rope(x, cos, sin, rot, *, scale=1.0, tm=256):
    """x: [n_heads, T, D]; partial NeoX rotary applied to all heads per step."""
    NH, T, D = x.shape
    half = cos.shape[1]
    tm = _tile(T, tm, 8)
    Tp = _round_up(T, tm)
    xp = _pad_axis(x, 1, Tp)
    cosp = _pad_axis(cos, 0, Tp)
    sinp = _pad_axis(sin, 0, Tp)
    out = pl.pallas_call(
        functools.partial(_rope_kernel, rot=rot, scale=scale),
        out_shape=jax.ShapeDtypeStruct((NH, Tp, D), x.dtype),
        grid=(Tp // tm,),
        in_specs=[pl.BlockSpec((NH, tm, D), lambda i: (0, i, 0)),
                  pl.BlockSpec((tm, half), lambda i: (i, 0)),
                  pl.BlockSpec((tm, half), lambda i: (i, 0))],
        out_specs=pl.BlockSpec((NH, tm, D), lambda i: (0, i, 0)),
        compiler_params=_cparams(("parallel",)),
    )(xp, cosp, sinp)
    return out[:, :T] if Tp != T else out


def flash_attention(q, k, v, *, tq=128, tk=128):
    """q: [H, T, D], k/v: [KV, T, D] -> out: [H, T, D].  Scale folded into q."""
    H, T, D = q.shape
    KV = k.shape[0]
    group = H // KV
    t = _tile(T, min(tq, tk), 8)
    tq = tk = t
    Tp = _round_up(T, t)
    qp = _pad_axis(q, 1, Tp)
    kp = _pad_axis(k, 1, Tp)
    vp = _pad_axis(v, 1, Tp)

    # Clamp the kv block index to the last causally-contributing tile so the
    # skipped upper-triangular tiles re-use the previous block (DMA elided).
    def kv_map(h, i, j):
        return (h // group, jnp.minimum(j, (i * tq + tq - 1) // tk), 0)

    out = pl.pallas_call(
        functools.partial(_flash_attn_kernel, tq=tq, tk=tk),
        out_shape=jax.ShapeDtypeStruct((H, Tp, D), q.dtype),
        grid=(H, Tp // tq, Tp // tk),
        in_specs=[
            pl.BlockSpec((None, tq, D), lambda h, i, j: (h, i, 0)),
            pl.BlockSpec((None, tk, D), kv_map),
            pl.BlockSpec((None, tk, D), kv_map),
        ],
        out_specs=pl.BlockSpec((None, tq, D), lambda h, i, j: (h, i, 0)),
        scratch_shapes=[pltpu.VMEM((tq, 1), jnp.float32),
                        pltpu.VMEM((tq, 1), jnp.float32),
                        pltpu.VMEM((tq, D), jnp.float32)],
        compiler_params=_cparams(("parallel", "parallel", "arbitrary")),
    )(qp, kp, vp)
    return out[:, :T] if Tp != T else out


def mlp(x, wg, wu, wd, *, tm=256, ti=512):
    T, K = x.shape
    I = wg.shape[1]
    N = wd.shape[1]
    tm = _tile(T, tm, 8)
    ti = _tile(I, ti, 128)
    Tp, Ip = _round_up(T, tm), _round_up(I, ti)
    xp = _pad_axis(x, 0, Tp)
    wgp = _pad_axis(wg, 1, Ip)
    wup = _pad_axis(wu, 1, Ip)
    wdp = _pad_axis(wd, 0, Ip)
    out = pl.pallas_call(
        _mlp_kernel,
        out_shape=jax.ShapeDtypeStruct((Tp, N), x.dtype),
        grid=(Tp // tm, Ip // ti),
        in_specs=[pl.BlockSpec((tm, K), lambda i, j: (i, 0)),
                  pl.BlockSpec((K, ti), lambda i, j: (0, j)),
                  pl.BlockSpec((K, ti), lambda i, j: (0, j)),
                  pl.BlockSpec((ti, N), lambda i, j: (j, 0))],
        out_specs=pl.BlockSpec((tm, N), lambda i, j: (i, 0)),
        scratch_shapes=[pltpu.VMEM((tm, N), jnp.float32)],
        compiler_params=_cparams(("parallel", "arbitrary")),
    )(xp, wgp, wup, wdp)
    return out[:T] if Tp != T else out


# --------------------------- model (Pallas path) ------------------------------

CFG = dict(
    vocab_size=128,
    hidden_size=32,
    num_heads=4,
    num_kv_heads=2,
    head_dim=8,
    intermediate_size=64,
    num_layers=2,
    rope_theta=10000.0,
    rope_pct=0.5,        # partial rotary
    norm_eps=1e-5,
    use_qkv_bias=True,
)


def _rope_tables(positions, rot, theta):
    inv_freq = 1.0 / (theta ** (jnp.arange(0, rot, 2, dtype=jnp.float32) / rot))
    freqs = positions.astype(jnp.float32)[:, None] * inv_freq[None, :]
    return jnp.cos(freqs), jnp.sin(freqs)          # each [T, rot//2]


def stablelm_forward(params, input_ids, positions, cfg):
    T = input_ids.shape[0]
    H, KV, D = cfg["num_heads"], cfg["num_kv_heads"], cfg["head_dim"]
    rot = int(D * cfg["rope_pct"])
    assert rot % 2 == 0 and 0 < rot <= D
    eps = cfg["norm_eps"]
    scale = D ** -0.5

    hidden = jnp.take(params["embed"], input_ids, axis=0)        # glue: gather
    cos, sin = _rope_tables(positions, rot, cfg["rope_theta"])

    for layer in params["layers"]:
        # --- self attention block ---
        residual = hidden
        x = layernorm(hidden, layer["ln1_g"], layer["ln1_b"], eps)
        qkv = linear(x, layer["wqkv"], layer["bqkv"])
        q, k, v = jnp.split(qkv, [H * D, H * D + KV * D], axis=-1)
        # TODO(synk): head split/merge transposes stay in XLA (see file header).
        q = q.reshape(T, H, D).transpose(1, 0, 2)                 # [H, T, D]
        k = k.reshape(T, KV, D).transpose(1, 0, 2)                # [KV, T, D]
        v = v.reshape(T, KV, D).transpose(1, 0, 2)
        # RoPE once per tensor (all heads batched per row tile); the attention
        # scale is folded into q here so the flash kernel skips the multiply.
        q = apply_rope(q, cos, sin, rot, scale=scale)
        k = apply_rope(k, cos, sin, rot)
        attn = flash_attention(q, k, v)                           # [H, T, D]
        attn = attn.transpose(1, 0, 2).reshape(T, H * D)
        hidden = residual + linear(attn, layer["wo"])             # no bias
        # --- MLP block ---
        residual = hidden
        x = layernorm(hidden, layer["ln2_g"], layer["ln2_b"], eps)
        hidden = residual + mlp(x, layer["wg"], layer["wu"], layer["wd"])

    return layernorm(hidden, params["norm_g"], params["norm_b"], eps)


# --------------------------- pure-JAX reference -------------------------------

def _ref_ln(x, g, b, eps):
    mean = jnp.mean(x, -1, keepdims=True)
    var = jnp.mean((x - mean) ** 2, -1, keepdims=True)
    return (x - mean) * jax.lax.rsqrt(var + eps) * g + b


def _ref_rope(x, cos, sin, rot):           # x: [T, n_heads, D]
    half = rot // 2
    x1, x2, xp = x[..., :half], x[..., half:rot], x[..., rot:]
    c, s = cos[:, None, :], sin[:, None, :]
    return jnp.concatenate([x1 * c - x2 * s, x2 * c + x1 * s, xp], axis=-1)


def ref_forward(params, input_ids, positions, cfg):
    f = lambda a: a.astype(jnp.float32)
    T = input_ids.shape[0]
    H, KV, D = cfg["num_heads"], cfg["num_kv_heads"], cfg["head_dim"]
    rot = int(D * cfg["rope_pct"])
    eps = cfg["norm_eps"]
    scale = D ** -0.5
    hp = jax.lax.Precision.HIGHEST

    hidden = jnp.take(f(params["embed"]), input_ids, axis=0)
    cos, sin = _rope_tables(positions, rot, cfg["rope_theta"])

    for layer in params["layers"]:
        residual = hidden
        x = _ref_ln(hidden, f(layer["ln1_g"]), f(layer["ln1_b"]), eps)
        qkv = jnp.dot(x, f(layer["wqkv"]), precision=hp) + f(layer["bqkv"])
        q, k, v = jnp.split(qkv, [H * D, H * D + KV * D], axis=-1)
        q = _ref_rope(q.reshape(T, H, D), cos, sin, rot)
        k = _ref_rope(k.reshape(T, KV, D), cos, sin, rot)
        v = v.reshape(T, KV, D)
        k = jnp.repeat(k, H // KV, axis=1)
        v = jnp.repeat(v, H // KV, axis=1)
        s = jnp.einsum("qhd,khd->hqk", q, k, precision=hp) * scale
        qi = jnp.arange(T)[:, None]
        ki = jnp.arange(T)[None, :]
        s = jnp.where((ki <= qi)[None], s, -1e30)
        p = jax.nn.softmax(s, axis=-1)
        o = jnp.einsum("hqk,khd->qhd", p, v, precision=hp).reshape(T, H * D)
        hidden = residual + jnp.dot(o, f(layer["wo"]), precision=hp)

        residual = hidden
        x = _ref_ln(hidden, f(layer["ln2_g"]), f(layer["ln2_b"]), eps)
        g = jnp.dot(x, f(layer["wg"]), precision=hp)
        u = jnp.dot(x, f(layer["wu"]), precision=hp)
        h = (g * jax.nn.sigmoid(g)) * u
        hidden = residual + jnp.dot(h, f(layer["wd"]), precision=hp)

    return _ref_ln(hidden, f(params["norm_g"]), f(params["norm_b"]), eps)


# ------------------------------- param init -----------------------------------

def init_params(key, cfg):
    hs = cfg["hidden_size"]
    H, KV, D = cfg["num_heads"], cfg["num_kv_heads"], cfg["head_dim"]
    inter = cfg["intermediate_size"]

    def nrm(k, shape, s=0.02):
        return s * jax.random.normal(k, shape, dtype=jnp.float32)

    keys = jax.random.split(key, 2 + cfg["num_layers"])
    params = {
        "embed": nrm(keys[0], (cfg["vocab_size"], hs)),
        "norm_g": 1.0 + nrm(keys[1], (hs,), 0.01),
        "norm_b": nrm(keys[1], (hs,), 0.01),
        "layers": [],
    }
    for li in range(cfg["num_layers"]):
        lk = jax.random.split(keys[2 + li], 10)
        params["layers"].append(dict(
            ln1_g=1.0 + nrm(lk[0], (hs,), 0.01), ln1_b=nrm(lk[1], (hs,), 0.01),
            ln2_g=1.0 + nrm(lk[2], (hs,), 0.01), ln2_b=nrm(lk[3], (hs,), 0.01),
            wqkv=nrm(lk[4], (hs, (H + 2 * KV) * D)),
            bqkv=nrm(lk[5], ((H + 2 * KV) * D,)),
            wo=nrm(lk[6], (H * D, hs)),
            wg=nrm(lk[7], (hs, inter)),
            wu=nrm(lk[8], (hs, inter)),
            wd=nrm(lk[9], (inter, hs)),
        ))
    return params


def cast_params(params, dtype):
    """Cast the large weight matrices to `dtype`; keep norms/biases in f32."""
    out = {
        "embed": params["embed"].astype(dtype),
        "norm_g": params["norm_g"],
        "norm_b": params["norm_b"],
        "layers": [],
    }
    for layer in params["layers"]:
        out["layers"].append(dict(
            ln1_g=layer["ln1_g"], ln1_b=layer["ln1_b"],
            ln2_g=layer["ln2_g"], ln2_b=layer["ln2_b"],
            wqkv=layer["wqkv"].astype(dtype), bqkv=layer["bqkv"],
            wo=layer["wo"].astype(dtype),
            wg=layer["wg"].astype(dtype),
            wu=layer["wu"].astype(dtype),
            wd=layer["wd"].astype(dtype),
        ))
    return out


# ---------------------------------- main ---------------------------------------

if __name__ == "__main__":
    key = jax.random.PRNGKey(0)
    pkey, ikey = jax.random.split(key)
    params = init_params(pkey, CFG)

    T = 8
    input_ids = jax.random.randint(ikey, (T,), 0, CFG["vocab_size"], dtype=jnp.int32)
    positions = jnp.arange(T, dtype=jnp.int32)

    # ---- float32 path: tight numerical check against the pure-JAX reference.
    out_f32 = jax.block_until_ready(
        stablelm_forward(params, input_ids, positions, CFG))
    ref_f32 = ref_forward(params, input_ids, positions, CFG)
    assert out_f32.shape == (T, CFG["hidden_size"])
    assert jnp.allclose(out_f32, ref_f32, atol=3e-3, rtol=3e-3), \
        "f32 Pallas/ref mismatch"

    # ---- bf16 path: bf16 MXU operands, f32 accumulation (perf configuration).
    params_bf16 = cast_params(params, jnp.bfloat16)
    out_bf16 = jax.block_until_ready(
        stablelm_forward(params_bf16, input_ids, positions, CFG))
    ref_bf16 = ref_forward(params_bf16, input_ids, positions, CFG)
    out_bf16_f = out_bf16.astype(jnp.float32)
    assert bool(jnp.all(jnp.isfinite(out_bf16_f)))
    assert jnp.allclose(out_bf16_f, ref_bf16, atol=1e-1, rtol=1e-1), \
        "bf16 Pallas/ref mismatch"

    print("KERNEL_OK")
</pallas_src>

<mosaic_0001>
module attributes {stable_mosaic.version = 11 : i64} {
  func.func @_layernorm_kernel(%arg0: i32, %arg1: memref<8x32xf32, #tpu.memory_space<vmem>>, %arg2: memref<1x32xf32, #tpu.memory_space<vmem>>, %arg3: memref<1x32xf32, #tpu.memory_space<vmem>>, %arg4: memref<8x32xf32, #tpu.memory_space<vmem>>) attributes {dimension_semantics = [#tpu.dimension_semantics<parallel>], iteration_bounds = array<i64: 1>, scalar_prefetch = 0 : i64, scratch_operands = 0 : i64, tpu.core_type = #tpu.core_type<tc>, window_params = [{transform_indices = @transform_0, window_bounds = array<i64: 8, 32>}, {pipeline_mode = #tpu.pipeline_mode<synchronous>, transform_indices = @transform_1, window_bounds = array<i64: 1, 32>}, {pipeline_mode = #tpu.pipeline_mode<synchronous>, transform_indices = @transform_2, window_bounds = array<i64: 1, 32>}, {transform_indices = @transform_3, window_bounds = array<i64: 8, 32>}]} {
    %c0 = arith.constant 0 : index
    %c0_0 = arith.constant 0 : index
    %0 = vector.load %arg1[%c0, %c0_0] : memref<8x32xf32, #tpu.memory_space<vmem>>, vector<8x32xf32>
    %cst = arith.constant dense<0.000000e+00> : vector<8xf32>
    %1 = vector.multi_reduction <add>, %0, %cst [1] : vector<8x32xf32> to vector<8xf32>
    %2 = vector.shape_cast %1 : vector<8xf32> to vector<8x1xf32>
    %cst_1 = arith.constant 3.200000e+01 : f32
    %3 = vector.broadcast %cst_1 : f32 to vector<8x1xf32>
    %4 = arith.divf %2, %3 : vector<8x1xf32>
    %5 = vector.broadcast %4 : vector<8x1xf32> to vector<8x32xf32>
    %6 = arith.subf %0, %5 : vector<8x32xf32>
    %7 = arith.mulf %6, %6 : vector<8x32xf32>
    %cst_2 = arith.constant dense<0.000000e+00> : vector<8xf32>
    %8 = vector.multi_reduction <add>, %7, %cst_2 [1] : vector<8x32xf32> to vector<8xf32>
    %9 = vector.shape_cast %8 : vector<8xf32> to vector<8x1xf32>
    %cst_3 = arith.constant 3.200000e+01 : f32
    %10 = vector.broadcast %cst_3 : f32 to vector<8x1xf32>
    %11 = arith.divf %9, %10 : vector<8x1xf32>
    %12 = vector.broadcast %4 : vector<8x1xf32> to vector<8x32xf32>
    %13 = arith.subf %0, %12 : vector<8x32xf32>
    %cst_4 = arith.constant 9.99999974E-6 : f32
    %14 = vector.broadcast %cst_4 : f32 to vector<8x1xf32>
    %15 = arith.addf %11, %14 : vector<8x1xf32>
    %16 = math.rsqrt %15 : vector<8x1xf32>
    %17 = vector.broadcast %16 : vector<8x1xf32> to vector<8x32xf32>
    %18 = arith.mulf %13, %17 : vector<8x32xf32>
    %c0_5 = arith.constant 0 : index
    %c0_6 = arith.constant 0 : index
    %19 = vector.load %arg2[%c0_5, %c0_6] : memref<1x32xf32, #tpu.memory_space<vmem>>, vector<1x32xf32>
    %20 = vector.broadcast %19 : vector<1x32xf32> to vector<8x32xf32>
    %21 = arith.mulf %18, %20 : vector<8x32xf32>
    %c0_7 = arith.constant 0 : index
    %c0_8 = arith.constant 0 : index
    %22 = vector.load %arg3[%c0_7, %c0_8] : memref<1x32xf32, #tpu.memory_space<vmem>>, vector<1x32xf32>
    %23 = vector.broadcast %22 : vector<1x32xf32> to vector<8x32xf32>
    %24 = arith.addf %21, %23 : vector<8x32xf32>
    %c0_9 = arith.constant 0 : index
    %c0_10 = arith.constant 0 : index
    %25 = vector.load %arg4[%c0_9, %c0_10] : memref<8x32xf32, #tpu.memory_space<vmem>>, vector<8x32xf32>
    tpu.vector_store %arg4[%c0_9, %c0_10], %24 {strides = array<i32>} : memref<8x32xf32, #tpu.memory_space<vmem>>, vector<8x32xf32>,
    return
  }
  func.func @transform_0(%arg0: i32) -> (i32, i32) {
    %c0_i32 = arith.constant 0 : i32
    %c0_i32_0 = arith.constant 0 : i32
    return %arg0, %c0_i32 : i32, i32
  }
  func.func @transform_1(%arg0: i32) -> (i32, i32) {
    %c0_i32 = arith.constant 0 : i32
    %c0_i32_0 = arith.constant 0 : i32
    %c0_i32_1 = arith.constant 0 : i32
    return %c0_i32, %c0_i32_0 : i32, i32
  }
  func.func @transform_2(%arg0: i32) -> (i32, i32) {
    %c0_i32 = arith.constant 0 : i32
    %c0_i32_0 = arith.constant 0 : i32
    %c0_i32_1 = arith.constant 0 : i32
    return %c0_i32, %c0_i32_0 : i32, i32
  }
  func.func @transform_3(%arg0: i32) -> (i32, i32) {
    %c0_i32 = arith.constant 0 : i32
    %c0_i32_0 = arith.constant 0 : i32
    return %arg0, %c0_i32 : i32, i32
  }
}

</mosaic_0001>

<llo_original>
// kernel: tpu_custom_call.1
$region0: #{tpu_custom_call.1}
  #allocation0 [shape = 'u32[]', space=smem, size = 0x4, offset = 0x4, fixed_abs, tag = 'smem constant byte address 0x4 - core index']
  #allocation1 [shape = 'u32[144,128]{1,0:T(1,128)}', space=vmem, size = 0x12000, scoped, tag = 'internal scratch']
  %s0 = inlined_call_operand.hbm [shape: f32[8,32], index: 0, kind: input, shape index: {}]
  %s1 = inlined_call_operand.vmem [shape: f32[1,32], index: 1, kind: input, shape index: {}]
  %s2 = inlined_call_operand.vmem [shape: f32[1,32], index: 2, kind: input, shape index: {}]
  %s3 = inlined_call_operand.hbm [shape: f32[8,32], index: 3, kind: output, shape index: {}]
  %s4 = sld [smem:[#allocation0]]
  $region26: #{tpu_custom_call.1} parent=0
    _
  %s6 = ssub.s32 1, %s4
  %s7 = scalar_select 0, %s6, %s4
  $region1: #{tpu_custom_call.1} parent=0
    #allocation2 [shape = 'u8[4096]{0}', space=vmem, size = 0x1000, scoped, tag = 'input window, operand 0, single buffered']
    #allocation3 [shape = 's32[1]{0}', space=sflag, size = 0x4, scoped, tag = 'scoped memory for tpu_custom_call.1']
    #allocation4 [shape = 's32[1]{0}', space=sflag, size = 0x4, scoped, tag = 'scoped memory for tpu_custom_call.1']
    #allocation5 [shape = 'u8[4096]{0}', space=vmem, size = 0x1000, scoped, tag = 'output window, operand 0, single buffered']
    %8 = vsyncpa [#allocation3], 0
    %9 = vsyncpa [#allocation4], 0
    // Predicated region
    $region2: #{tpu_custom_call.1} parent=1 // pred_check
      _
    $region3: #{tpu_custom_call.1} parent=1 // pred_check_branch
      %11 = sbr.rel (0) target = $region5
    $region4: #{tpu_custom_call.1} parent=1 // pred_region
      %s13 = ssub.s32 128, 128
      %14 = vsyncadd [#allocation3], %s13
      %s16 = sshll.u32 [#allocation2], 4
      %s17 = int_to_ptr.vmem [resolvable:$true] %s16
      %19 = dma.hbm_to_vmem [thread:$0]  %s0, 128, %s17, [#allocation3]
    $region5: #{tpu_custom_call.1} parent=1 // pred_fallthru
      _
    // Predicated region
    $region6: #{tpu_custom_call.1} parent=1 // pred_check
      _
    $region7: #{tpu_custom_call.1} parent=1 // pred_check_branch
      %21 = sbr.rel (0) target = $region9
    $region8: #{tpu_custom_call.1} parent=1 // pred_region
      _
    $region9: #{tpu_custom_call.1} parent=1 // pred_fallthru
      _
    // Predicated region
    $region10: #{tpu_custom_call.1} parent=1 // pred_check
      _
    $region11: #{tpu_custom_call.1} parent=1 // pred_check_branch
      %23 = sbr.rel (0) target = $region13
    $region12: #{tpu_custom_call.1} parent=1 // pred_region
      _
    $region13: #{tpu_custom_call.1} parent=1 // pred_fallthru
      _
    // Predicated region
    $region14: #{tpu_custom_call.1} parent=1 // pred_check
      _
    $region15: #{tpu_custom_call.1} parent=1 // pred_check_branch
      %25 = sbr.rel (0) target = $region17
    $region16: #{tpu_custom_call.1} parent=1 // pred_region
      %26 = dma.done [#allocation3], 128
    $region17: #{tpu_custom_call.1} parent=1 // pred_fallthru
      _
    %v27 = vld [vmem:[#allocation2] sm:$0xff]
    %vm28 = vcmask 261120
    %v29 = vsel %vm28, %v27, 0.0
    %30 = vadd.xlane.f32.xlu0 %v29
    %v31 = vpop.xlane.xlu0 %30
    %v32 = vrcp.pop 32.0
    %v33 = vmul.f32 %v31, %v32
    %v34 = vsub.f32 %v27, %v33
    %v35 = vmul.f32 %v34, %v34
    %v36 = vsel %vm28, %v35, 0.0
    %37 = vadd.xlane.f32.xlu0 %v36
    %v38 = vpop.xlane.xlu0 %37
    %v39 = vmul.f32 %v38, %v32
    %v40 = vadd.f32 %v39, 1e-05
    %v41 = vrsqrt.pop %v40
    %v42 = vmul.f32 %v34, %v41
    %v43 = vld [vmem:[%s1] sm:$0x1]
    %v45 = vlaneseq
    %v46 = vshrl.u32 %v45, 7
    %v47 = vsub.s32 0, %v46
    %v48 = vrot.slane %v43, %v47
    %v50 = vmul.f32 %v42, %v48
    %v51 = vld [vmem:[%s2] sm:$0x1]
    %v53 = vlaneseq
    %v54 = vshrl.u32 %v53, 7
    %v55 = vsub.s32 0, %v54
    %v56 = vrot.slane %v51, %v55
    %v58 = vadd.f32 %v50, %v56
    %59 = vst.msk [vmem:[#allocation5] sm:$0xff] %vm28, %v58
    // Predicated region
    $region18: #{tpu_custom_call.1} parent=1 // pred_check
      _
    $region19: #{tpu_custom_call.1} parent=1 // pred_check_branch
      %61 = sbr.rel (0) target = $region21
    $region20: #{tpu_custom_call.1} parent=1 // pred_region
      %s63 = ssub.s32 128, 128
      %64 = vsyncadd [#allocation4], %s63
      %s66 = sshll.u32 [#allocation5], 4
      %s67 = int_to_ptr.vmem [resolvable:$true] %s66
      %69 = dma.vmem_to_hbm [thread:$0]  %s67, 128, %s3, [#allocation4]
    $region21: #{tpu_custom_call.1} parent=1 // pred_fallthru
      _
    // Predicated region
    $region22: #{tpu_custom_call.1} parent=1 // pred_check
      _
    $region23: #{tpu_custom_call.1} parent=1 // pred_check_branch
      %71 = sbr.rel (0) target = $region25
    $region24: #{tpu_custom_call.1} parent=1 // pred_region
      %72 = dma.done [#allocation4], 128
    $region25: #{tpu_custom_call.1} parent=1 // pred_fallthru
      _
    %73 = vsyncpa [#allocation3], 1
    %74 = vsyncpa [#allocation4], 1

</llo_original>
